<compile_context>
chip_gen: v7x
topology: tpu7x:2x2x1
jax: 0.10.0
libtpu: 0.0.40
codegen_flags: <defaults>
</compile_context>

<pallas_src>
import functools

import jax
import jax.numpy as jnp
from jax.experimental import pallas as pl
from jax.experimental.pallas import tpu as pltpu


def _eca_kernel(hw_total, ragged, w_ref, x_ref, o_ref, acc_ref, scale_ref):
    # w_ref:     SMEM (3,) f32          conv1d taps [w0, w1, w2] (scalar prefetch)
    # x_ref:     VMEM (1, C, THW)       NCHW input tile (C on sublanes, HW on lanes)
    # o_ref:     VMEM (1, C, THW)       output tile
    # acc_ref:   VMEM (Cpad, 1) f32     running pooled sum (Cpad = roundup(C, 8))
    # scale_ref: VMEM (Cpad, 1) f32     sigmoid(conv(pool)) per-channel scale
    phase = pl.program_id(1)
    tile = pl.program_id(2)
    C = x_ref.shape[1]
    thw = x_ref.shape[2]
    cpad = acc_ref.shape[0]

    # ---- phase 0: accumulate the global average pool (sum over HW tiles) ----
    @pl.when(phase == 0)
    def _pool():
        @pl.when(tile == 0)
        def _init():
            acc_ref[...] = jnp.zeros_like(acc_ref)

        xf = x_ref[0].astype(jnp.float32)                            # (C, THW)
        if ragged:
            # Ragged (cdiv) last tile: mask lanes beyond the true HW extent.
            lane = jax.lax.broadcasted_iota(jnp.int32, (C, thw), 1)
            valid = (tile * thw + lane) < hw_total
            xf = jnp.where(valid, xf, 0.0)
        acc_ref[:C, :] += jnp.sum(xf, axis=1, keepdims=True)         # (C, 1)

    # ---- phase 1: 3-tap channel conv + sigmoid (once), then rescale each tile ----
    @pl.when(phase == 1)
    def _apply():
        @pl.when(tile == 0)
        def _make_scale():
            pooled = acc_ref[...] * (1.0 / hw_total)                 # (Cpad, 1) f32
            row = jax.lax.broadcasted_iota(jnp.int32, (cpad, 1), 0)
            # p[c-1] / p[c+1] via XLU sublane rotation on the 8-aligned padded
            # column; mask boundary rows to reproduce conv1d's zero padding.
            left = pltpu.roll(pooled, shift=1, axis=0)
            left = jnp.where(row == 0, 0.0, left)
            right = pltpu.roll(pooled, shift=cpad - 1, axis=0)       # == shift by -1
            right = jnp.where(row == C - 1, 0.0, right)
            y = w_ref[0] * left + w_ref[1] * pooled + w_ref[2] * right
            scale_ref[...] = jax.nn.sigmoid(y)

        # Rescale in the input dtype; per-sublane scalar broadcast across lanes.
        s = scale_ref[:C, :].astype(o_ref.dtype)                     # (C, 1)
        o_ref[...] = (x_ref[...] * s[None, :, :]).astype(o_ref.dtype)


def _vmem_budget(max_block_bytes=None, vmem_limit_bytes=None):
    """Generation-aware per-block byte budget and scoped VMEM limit."""
    phys = 64 * 1024 * 1024                     # conservative default (v7x per-TC)
    try:
        info = pltpu.get_tpu_info()
        phys = int(getattr(info, "vmem_capacity_bytes", phys)) or phys
    except Exception:
        pass
    limit = min(phys * 3 // 4, 96 * 1024 * 1024)   # v5e/v6e -> 96 MiB, v7x -> 48 MiB
    if vmem_limit_bytes is not None:
        limit = vmem_limit_bytes
    block = limit // 5                              # 4x block (dbl-buffered in+out) + slack
    if max_block_bytes is not None:
        block = min(block, max_block_bytes)
    else:
        block = max(block, 1 << 20)
    return block, limit


def _pick_hw_tile(hw, c, itemsize, max_block_bytes):
    """Choose the HW tile size.  Returns (thw, n_tiles, ragged)."""
    cap = max(1, max_block_bytes // max(1, c * itemsize))
    if hw <= cap:
        return hw, 1, False                      # single tile: x read from HBM once
    # Prefer a divisor of HW that is a multiple of 128 (lane-aligned, no ragged tile).
    best = 0
    d = 1
    while d * d <= hw:
        if hw % d == 0:
            for cand in (d, hw // d):
                if cand % 128 == 0 and cand <= cap and cand > best:
                    best = cand
        d += 1
    if best > 0:
        return best, hw // best, False
    # Otherwise: cdiv grid with a masked (ragged) last tile — never exceed the budget
    # by more than one lane group, never fall back to a full-extent block.
    thw = max(128, (cap // 128) * 128)
    n = -(-hw // thw)
    return thw, n, (hw % thw != 0)


def eca_layer_pallas(x, conv_w, *, max_block_bytes=None, vmem_limit_bytes=None):
    """x: (B, C, H, W); conv_w: Conv1d(1,1,k=3,pad=1,bias=False) weights (any shape, 3 taps)."""
    B, C, H, W = x.shape
    HW = H * W

    # Free reshape: NCHW memory layout is identical to (B, C, HW).  No transposes.
    x3 = x.reshape(B, C, HW)

    block_bytes, vmem_limit = _vmem_budget(max_block_bytes, vmem_limit_bytes)
    thw, n_hw, ragged = _pick_hw_tile(HW, C, x.dtype.itemsize, block_bytes)
    cpad = ((C + 7) // 8) * 8
    w = jnp.asarray(conv_w, jnp.float32).reshape(-1)                 # (3,) -> SMEM
    assert w.shape[0] == 3, "expected a 3-tap channel conv"

    kernel = functools.partial(_eca_kernel, HW, ragged)

    passes = 2 if n_hw == 1 else 3               # single-tile: 1 read + 1 write of x
    cost = pl.CostEstimate(
        flops=2 * B * HW * C,
        transcendentals=B * C,
        bytes_accessed=passes * B * HW * C * x.dtype.itemsize,
    )

    out3 = pl.pallas_call(
        kernel,
        out_shape=jax.ShapeDtypeStruct((B, C, HW), x.dtype),
        grid_spec=pltpu.PrefetchScalarGridSpec(
            num_scalar_prefetch=1,                                   # conv taps -> SMEM
            grid=(B, 2, n_hw),                                       # batch, phase, hw-tile
            in_specs=[
                pl.BlockSpec((1, C, thw), lambda b, p, t, w_: (b, 0, t)),
            ],
            # Phase 0 never writes the output: keep its block index pinned at (b,0,0)
            # so nothing is flushed until phase 1 has filled each tile.
            out_specs=pl.BlockSpec((1, C, thw), lambda b, p, t, w_: (b, 0, t * p)),
            scratch_shapes=[
                pltpu.VMEM((cpad, 1), jnp.float32),                  # pooled-sum accumulator
                pltpu.VMEM((cpad, 1), jnp.float32),                  # sigmoid scale
            ],
        ),
        compiler_params=pltpu.CompilerParams(
            dimension_semantics=("parallel", "arbitrary", "arbitrary"),
            vmem_limit_bytes=vmem_limit,
        ),
        cost_estimate=cost,
    )(w, x3)

    return out3.reshape(B, C, H, W)


def _eca_reference(x, conv_w):
    """Plain-JAX reference mirroring the PyTorch forward."""
    B, C, H, W = x.shape
    w = jnp.asarray(conv_w, jnp.float32).reshape(-1)
    pooled = jnp.mean(x.astype(jnp.float32), axis=(2, 3))            # (B, C)
    padded = jnp.pad(pooled, ((0, 0), (1, 1)))                        # (B, C+2)
    y = (w[0] * padded[:, 0:C]
         + w[1] * padded[:, 1:C + 1]
         + w[2] * padded[:, 2:C + 2])                                 # (B, C)
    y = jax.nn.sigmoid(y)
    return (x * y[:, :, None, None].astype(x.dtype)).astype(x.dtype)


if __name__ == "__main__":
    key = jax.random.PRNGKey(0)
    kx, kw, kx2 = jax.random.split(key, 3)

    B, C, H, W = 2, 4, 16, 16
    x = jax.random.normal(kx, (B, C, H, W), dtype=jnp.float32)
    # Conv1d(1, 1, kernel_size=3, bias=False) weight (flattened to (3,)).
    conv_w = jax.random.uniform(kw, (3,), dtype=jnp.float32,
                                minval=-0.577, maxval=0.577)

    ref = _eca_reference(x, conv_w)

    # 1) Single-tile fast path (whole per-batch slab in VMEM -> x read from HBM once).
    out1 = jax.block_until_ready(eca_layer_pallas(x, conv_w))
    assert out1.shape == (B, C, H, W)
    assert jnp.allclose(out1, ref, atol=1e-5, rtol=1e-5), "single-tile path mismatch"

    # 2) Multi-tile path with an evenly-divisible 128-lane tile (exercises both phases).
    out2 = jax.block_until_ready(eca_layer_pallas(x, conv_w, max_block_bytes=2048))
    assert jnp.allclose(out2, ref, atol=1e-5, rtol=1e-5), "tiled path mismatch"

    # 3) Multi-tile path with a ragged (masked) last HW tile: HW = 12*15 = 180.
    x2 = jax.random.normal(kx2, (2, 4, 12, 15), dtype=jnp.float32)
    ref2 = _eca_reference(x2, conv_w)
    out3 = jax.block_until_ready(eca_layer_pallas(x2, conv_w, max_block_bytes=2048))
    assert jnp.allclose(out3, ref2, atol=1e-5, rtol=1e-5), "ragged-tile path mismatch"

    print("KERNEL_OK")
</pallas_src>

<mosaic_0001>
module attributes {stable_mosaic.version = 11 : i64} {
  func.func @_eca_kernel(%arg0: i32, %arg1: i32, %arg2: i32, %arg3: memref<3xf32, #tpu.memory_space<smem>>, %arg4: memref<1x4x256xf32, #tpu.memory_space<vmem>>, %arg5: memref<1x4x256xf32, #tpu.memory_space<vmem>>, %arg6: memref<8x1xf32, #tpu.memory_space<vmem>>, %arg7: memref<8x1xf32, #tpu.memory_space<vmem>>) attributes {dimension_semantics = [#tpu.dimension_semantics<parallel>, #tpu.dimension_semantics<arbitrary>, #tpu.dimension_semantics<arbitrary>], iteration_bounds = array<i64: 2, 2, 1>, scalar_prefetch = 1 : i64, scratch_operands = 2 : i64, tpu.core_type = #tpu.core_type<tc>, window_params = [{transform_indices = @transform_0, window_bounds = array<i64: 1, 4, 256>}, {transform_indices = @transform_1, window_bounds = array<i64: 1, 4, 256>}]} {
    %c0_i32 = arith.constant 0 : i32
    %0 = arith.cmpi eq, %arg1, %c0_i32 : i32
    %1 = arith.extui %0 : i1 to i32
    %c0_i32_0 = arith.constant 0 : i32
    %2 = arith.cmpi ne, %1, %c0_i32_0 : i32
    scf.if %2 {
      %c0_i32_2 = arith.constant 0 : i32
      %6 = arith.cmpi eq, %arg2, %c0_i32_2 : i32
      %7 = arith.extui %6 : i1 to i32
      %c0_i32_3 = arith.constant 0 : i32
      %8 = arith.cmpi ne, %7, %c0_i32_3 : i32
      scf.if %8 {
        %cst_10 = arith.constant 0.000000e+00 : f32
        %16 = vector.broadcast %cst_10 : f32 to vector<8x1xf32>
        %c0_11 = arith.constant 0 : index
        %c0_12 = arith.constant 0 : index
        %17 = vector.load %arg6[%c0_11, %c0_12] : memref<8x1xf32, #tpu.memory_space<vmem>>, vector<8x1xf32>
        tpu.vector_store %arg6[%c0_11, %c0_12], %16 {strides = array<i32>} : memref<8x1xf32, #tpu.memory_space<vmem>>, vector<8x1xf32>,
      } else {
      }
      %c0 = arith.constant 0 : index
      %c0_4 = arith.constant 0 : index
      %c0_5 = arith.constant 0 : index
      %9 = vector.load %arg4[%c0, %c0_4, %c0_5] : memref<1x4x256xf32, #tpu.memory_space<vmem>>, vector<1x4x256xf32>
      %10 = vector.shape_cast %9 : vector<1x4x256xf32> to vector<4x256xf32>
      %c0_6 = arith.constant 0 : index
      %c0_7 = arith.constant 0 : index
      %11 = vector.load %arg6[%c0_6, %c0_7] : memref<8x1xf32, #tpu.memory_space<vmem>>, vector<4x1xf32>
      %cst = arith.constant dense<0.000000e+00> : vector<4xf32>
      %12 = vector.multi_reduction <add>, %10, %cst [1] : vector<4x256xf32> to vector<4xf32>
      %13 = vector.shape_cast %12 : vector<4xf32> to vector<4x1xf32>
      %14 = arith.addf %11, %13 : vector<4x1xf32>
      %c0_8 = arith.constant 0 : index
      %c0_9 = arith.constant 0 : index
      %15 = vector.load %arg6[%c0_8, %c0_9] : memref<8x1xf32, #tpu.memory_space<vmem>>, vector<4x1xf32>
      tpu.vector_store %arg6[%c0_8, %c0_9], %14 {strides = array<i32>} : memref<8x1xf32, #tpu.memory_space<vmem>>, vector<4x1xf32>,
    } else {
    }
    %c1_i32 = arith.constant 1 : i32
    %3 = arith.cmpi eq, %arg1, %c1_i32 : i32
    %4 = arith.extui %3 : i1 to i32
    %c0_i32_1 = arith.constant 0 : i32
    %5 = arith.cmpi ne, %4, %c0_i32_1 : i32
    scf.if %5 {
      %c0_i32_2 = arith.constant 0 : i32
      %6 = arith.cmpi eq, %arg2, %c0_i32_2 : i32
      %7 = arith.extui %6 : i1 to i32
      %c0_i32_3 = arith.constant 0 : i32
      %8 = arith.cmpi ne, %7, %c0_i32_3 : i32
      scf.if %8 {
        %c0_11 = arith.constant 0 : index
        %c0_12 = arith.constant 0 : index
        %15 = vector.load %arg6[%c0_11, %c0_12] : memref<8x1xf32, #tpu.memory_space<vmem>>, vector<8x1xf32>
        %cst = arith.constant 3.906250e-03 : f32
        %16 = vector.broadcast %cst : f32 to vector<8x1xf32>
        %17 = arith.mulf %15, %16 : vector<8x1xf32>
        %18 = tpu.iota {dimensions = array<i32: 0>} : vector<8x1xi32>
        %c1_i32_13 = arith.constant 1 : i32
        %19 = tpu.dynamic_rotate %17 by %c1_i32_13 dim 0 : vector<8x1xf32>, i32 -> vector<8x1xf32>
        %c0_i32_14 = arith.constant 0 : i32
        %20 = vector.broadcast %c0_i32_14 : i32 to vector<8x1xi32>
        %21 = arith.cmpi eq, %18, %20 : vector<8x1xi32>
        %cst_15 = arith.constant 0.000000e+00 : f32
        %22 = vector.broadcast %cst_15 : f32 to vector<8x1xf32>
        %23 = arith.select %21, %22, %19 : vector<8x1xi1>, vector<8x1xf32>
        %c7_i32 = arith.constant 7 : i32
        %24 = tpu.dynamic_rotate %17 by %c7_i32 dim 0 : vector<8x1xf32>, i32 -> vector<8x1xf32>
        %c3_i32 = arith.constant 3 : i32
        %25 = vector.broadcast %c3_i32 : i32 to vector<8x1xi32>
        %26 = arith.cmpi eq, %18, %25 : vector<8x1xi32>
        %cst_16 = arith.constant 0.000000e+00 : f32
        %27 = vector.broadcast %cst_16 : f32 to vector<8x1xf32>
        %28 = arith.select %26, %27, %24 : vector<8x1xi1>, vector<8x1xf32>
        %c0_17 = arith.constant 0 : index
        %29 = memref.load %arg3[%c0_17] : memref<3xf32, #tpu.memory_space<smem>>
        %30 = vector.broadcast %29 : f32 to vector<8x1xf32>
        %31 = arith.mulf %30, %23 : vector<8x1xf32>
        %c1 = arith.constant 1 : index
        %32 = memref.load %arg3[%c1] : memref<3xf32, #tpu.memory_space<smem>>
        %33 = vector.broadcast %32 : f32 to vector<8x1xf32>
        %34 = arith.mulf %33, %17 : vector<8x1xf32>
        %35 = arith.addf %31, %34 : vector<8x1xf32>
        %c2 = arith.constant 2 : index
        %36 = memref.load %arg3[%c2] : memref<3xf32, #tpu.memory_space<smem>>
        %37 = vector.broadcast %36 : f32 to vector<8x1xf32>
        %38 = arith.mulf %37, %28 : vector<8x1xf32>
        %39 = arith.addf %35, %38 : vector<8x1xf32>
        %40 = arith.negf %39 : vector<8x1xf32>
        %41 = math.exp %40 : vector<8x1xf32>
        %cst_18 = arith.constant 1.000000e+00 : f32
        %42 = vector.broadcast %cst_18 : f32 to vector<8x1xf32>
        %43 = arith.addf %42, %41 : vector<8x1xf32>
        %44 = arith.divf %42, %43 : vector<8x1xf32>
        %c0_19 = arith.constant 0 : index
        %c0_20 = arith.constant 0 : index
        %45 = vector.load %arg7[%c0_19, %c0_20] : memref<8x1xf32, #tpu.memory_space<vmem>>, vector<8x1xf32>
        tpu.vector_store %arg7[%c0_19, %c0_20], %44 {strides = array<i32>} : memref<8x1xf32, #tpu.memory_space<vmem>>, vector<8x1xf32>,
      } else {
      }
      %c0 = arith.constant 0 : index
      %c0_4 = arith.constant 0 : index
      %9 = vector.load %arg7[%c0, %c0_4] : memref<8x1xf32, #tpu.memory_space<vmem>>, vector<4x1xf32>
      %c0_5 = arith.constant 0 : index
      %c0_6 = arith.constant 0 : index
      %c0_7 = arith.constant 0 : index
      %10 = vector.load %arg4[%c0_5, %c0_6, %c0_7] : memref<1x4x256xf32, #tpu.memory_space<vmem>>, vector<1x4x256xf32>
      %11 = vector.shape_cast %9 : vector<4x1xf32> to vector<1x4x1xf32>
      %12 = vector.broadcast %11 : vector<1x4x1xf32> to vector<1x4x256xf32>
      %13 = arith.mulf %10, %12 : vector<1x4x256xf32>
      %c0_8 = arith.constant 0 : index
      %c0_9 = arith.constant 0 : index
      %c0_10 = arith.constant 0 : index
      %14 = vector.load %arg5[%c0_8, %c0_9, %c0_10] : memref<1x4x256xf32, #tpu.memory_space<vmem>>, vector<1x4x256xf32>
      tpu.vector_store %arg5[%c0_8, %c0_9, %c0_10], %13 {strides = array<i32>} : memref<1x4x256xf32, #tpu.memory_space<vmem>>, vector<1x4x256xf32>,
    } else {
    }
    return
  }
  func.func @transform_0(%arg0: i32, %arg1: i32, %arg2: i32, %arg3: memref<3xf32, #tpu.memory_space<smem>>) -> (i32, i32, i32) {
    %c0_i32 = arith.constant 0 : i32
    %c0_i32_0 = arith.constant 0 : i32
    return %arg0, %c0_i32, %arg2 : i32, i32, i32
  }
  func.func @transform_1(%arg0: i32, %arg1: i32, %arg2: i32, %arg3: memref<3xf32, #tpu.memory_space<smem>>) -> (i32, i32, i32) {
    %0 = arith.muli %arg2, %arg1 : i32
    %c0_i32 = arith.constant 0 : i32
    %c0_i32_0 = arith.constant 0 : i32
    return %arg0, %c0_i32, %0 : i32, i32, i32
  }
}

</mosaic_0001>

<llo_original>
// kernel: tpu_custom_call.1
$region0: #{tpu_custom_call.1}
  #allocation0 [shape = 'u32[]', space=smem, size = 0x4, offset = 0x4, fixed_abs, tag = 'smem constant byte address 0x4 - core index']
  #allocation1 [shape = 'u32[144,128]{1,0:T(1,128)}', space=vmem, size = 0x12000, scoped, tag = 'internal scratch']
  #allocation2 [shape = 'f32[8,1]{1,0:T(8,128)}', space=vmem, size = 0x1000, scoped, tag = 'scratch operand']
  #allocation3 [shape = 'f32[8,1]{1,0:T(8,128)}', space=vmem, size = 0x1000, scoped, tag = 'scratch operand']
  #allocation4 [shape = 's32[1]{0}', space=sflag, size = 0x4, scoped, tag = 'scoped memory for tpu_custom_call.1']
  #allocation5 [shape = 'u8[512]{0}', space=smem, size = 0x200, scoped, tag = 'prefetched SMEM operand 0']
  %s0 = inlined_call_operand.hbm [shape: f32[3], index: 0, kind: input, shape index: {}]
  %s1 = inlined_call_operand.hbm [shape: f32[2,4,256], index: 1, kind: input, shape index: {}]
  %s2 = inlined_call_operand.hbm [shape: f32[2,4,256], index: 2, kind: output, shape index: {}]
  %s3 = sld [smem:[#allocation0]]
  $region57: #{tpu_custom_call.1} parent=0
    _
  %s5 = ssub.s32 1, %s3
  %s6 = scalar_select 0, %s5, %s3
  %8 = dma.hbm_to_smem %s0, 16, [#allocation5], [#allocation4]
  %9 = dma.done [#allocation4], 16
  %10 = sfence
  $region1: #{tpu_custom_call.1} parent=0
    #allocation6 [shape = 'u8[8192]{0}', space=vmem, size = 0x2000, scoped, tag = 'input window, operand 1']
    #allocation7 [shape = 's32[2]{0}', space=sflag, size = 0x8, scoped, tag = 'scoped memory for tpu_custom_call.1']
    #allocation8 [shape = 's32[2]{0}', space=sflag, size = 0x8, scoped, tag = 'scoped memory for tpu_custom_call.1']
    #allocation9 [shape = 'u8[8192]{0}', space=vmem, size = 0x2000, scoped, tag = 'output window, operand 0']
    %11 = vsyncpa [#allocation7], 0
    %s12 = scalar_lea.sflag [#allocation7], 1
    %13 = vsyncpa %s12, 0
    %14 = vsyncpa [#allocation8], 0
    %s15 = scalar_lea.sflag [#allocation8], 1
    %16 = vsyncpa %s15, 0
    loop: start=0, step=1, limit=6
    $region2: #{tpu_custom_call.1} parent=1 // loop_pre_header
      _
    $region3: #{tpu_custom_call.1} parent=1 // loop_header
      %s18 = sphi 0, %s22
      %p19 = scmp.ge.s32.totalorder %s18, 6
      %s25 = sphi 0, %s44
      %s26 = sphi 0, %s40
      %s27 = sphi 0, %s36
      %s28 = sphi 0, %s25
      %s29 = sphi 0, %s26
      %s30 = sphi 0, %s27
      %s31 = sphi 0, %s28
      %s32 = sphi 0, %s29
      %s33 = sphi 0, %s30
      %s49 = sphi 0, %s51
      %s52 = sphi 0, %s49
      %s53 = sphi 0, %s52
      %s69 = sphi 0, %s53
      %s79 = sphi 0, %s81
      %s82 = sphi 0, %s79
      %s83 = sphi 0, %s82
      %s99 = sphi 0, %s83
    $region4: #{tpu_custom_call.1} parent=1 // loop_header_branch
      %21 = sbr.rel (%p19) target = $region8
    $region5: #{tpu_custom_call.1} parent=1 // loop_body
      %s23 = ssub.s32 %s18, 1
      %s24 = ssub.s32 %s18, 2
      %s34 = sadd.s32 1, %s27
      %p35 = scmp.ge.s32.totalorder %s34, 1
      %s36 = scalar_select %p35, 0, %s34
      %s37 = sadd.s32 1, %s26
      %s38 = scalar_select %p35, %s37, %s26
      %p39 = scmp.ge.s32.totalorder %s38, 2
      %s40 = scalar_select %p39, 0, %s38
      %s41 = sadd.s32 1, %s25
      %s42 = scalar_select %p39, %s41, %s25
      %p43 = scmp.ge.s32.totalorder %s42, 2
      %s44 = scalar_select %p43, 0, %s42
      %s45 = ssub.s32 %s25, %s44
      %s46 = ssub.s32 %s27, %s36
      %s47 = sor.u32 %s45, %s46
      %p48 = scmp.eq.s32.totalorder %s47, 0
      %s50 = sadd.s32 %s49, 1
      %s51 = scalar_select %p48, %s49, %s50
      %p54 = pneg %p48
      %p55 = scmp.eq.s32.totalorder %s18, 3
      %p56 = por %p54, %p55
      %p57 = scmp.ne.s32.totalorder %s49, %s52
      %p58 = scmp.eq.s32.totalorder %s18, 0
      %p59 = por %p57, %p58
      %p60 = scmp.ne.s32.totalorder %s49, %s52
      %p61 = scmp.eq.s32.totalorder %s23, 3
      %p62 = por %p60, %p61
      %p63 = scmp.ne.s32.totalorder %s52, %s53
      %p64 = scmp.eq.s32.totalorder %s23, 0
      %p65 = por %p63, %p64
      %p66 = scmp.ne.s32.totalorder %s52, %s53
      %p67 = scmp.eq.s32.totalorder %s24, 3
      %p68 = por %p66, %p67
      %p70 = scmp.ne.s32.totalorder %s53, %s69
      %p71 = scmp.eq.s32.totalorder %s24, 0
      %p72 = por %p70, %p71
      %s73 = smul.u32 %s27, %s26
      %s74 = smul.u32 %s36, %s40
      %s75 = ssub.s32 %s25, %s44
      %s76 = ssub.s32 %s73, %s74
      %s77 = sor.u32 %s75, %s76
      %p78 = scmp.eq.s32.totalorder %s77, 0
      %s80 = sadd.s32 %s79, 1
      %s81 = scalar_select %p78, %s79, %s80
      %p84 = pneg %p78
      %p85 = scmp.eq.s32.totalorder %s18, 3
      %p86 = por %p84, %p85
      %p87 = scmp.ne.s32.totalorder %s79, %s82
      %p88 = scmp.eq.s32.totalorder %s18, 0
      %p89 = por %p87, %p88
      %p90 = scmp.ne.s32.totalorder %s79, %s82
      %p91 = scmp.eq.s32.totalorder %s23, 3
      %p92 = por %p90, %p91
      %p93 = scmp.ne.s32.totalorder %s82, %s83
      %p94 = scmp.eq.s32.totalorder %s23, 0
      %p95 = por %p93, %p94
      %p96 = scmp.ne.s32.totalorder %s82, %s83
      %p97 = scmp.eq.s32.totalorder %s24, 3
      %p98 = por %p96, %p97
      %p100 = scmp.ne.s32.totalorder %s83, %s99
      %p101 = scmp.eq.s32.totalorder %s24, 0
      %p102 = por %p100, %p101
      %p103 = scmp.le.s32.totalorder 1, %s18
      %p104 = scmp.lt.s32.totalorder %s18, 5
      %p105 = pnand %p103, %p104
      %p106 = pneg %p105
      // Predicated region
      $region9: #{tpu_custom_call.1} parent=5 // pred_check
        _
      $region10: #{tpu_custom_call.1} parent=5 // pred_check_branch
        %108 = sbr.rel (%p105) target = $region12
      $region11: #{tpu_custom_call.1} parent=5 // pred_region
        %s109 = ssub.s32 %s18, 1
      $region12: #{tpu_custom_call.1} parent=5 // pred_fallthru
        _
      %p110 = scmp.lt.s32.totalorder %s18, 4
      // Predicated region
      $region13: #{tpu_custom_call.1} parent=5 // pred_check
        %p111 = pneg %p110
      $region14: #{tpu_custom_call.1} parent=5 // pred_check_branch
        %113 = sbr.rel (%p111) target = $region16
      $region15: #{tpu_custom_call.1} parent=5 // pred_region
        // Predicated region
        $region17: #{tpu_custom_call.1} parent=15 // pred_check
          %p114 = pneg %p59
        $region18: #{tpu_custom_call.1} parent=15 // pred_check_branch
          %116 = sbr.rel (%p114) target = $region20
        $region19: #{tpu_custom_call.1} parent=15 // pred_region
          %s117 = sand.u32 %s49, 1
          %s118 = scalar_lea.sflag [#allocation7], %s117
          %s119 = sand.u32 %s49, 1
          %s120 = smul.addr %s119, 8
          %s121 = scalar_lea.vmem [#allocation6], %s120
          %s122 = smul.u32 2, %s27
          %s124 = ssub.s32 128, 128
          %125 = vsyncadd %s118, %s124
          %s126 = smul.addr %s25, 2
          %s127 = sadd.s32 %s122, %s126
          %s128 = smul.addr %s127, 64
          %s129 = scalar_lea.hbm %s1, %s128
          %s131 = sshll.u32 %s121, 4
          %s132 = int_to_ptr.vmem [resolvable:$true] %s131
          %134 = dma.hbm_to_vmem [thread:$0]  %s129, 128, %s132, %s118
        $region20: #{tpu_custom_call.1} parent=15 // pred_fallthru
          _
      $region16: #{tpu_custom_call.1} parent=5 // pred_fallthru
        _
      %p135 = scmp.le.s32.totalorder 1, %s18
      %p136 = scmp.lt.s32.totalorder %s18, 5
      %p137 = pnand %p135, %p136
      %p138 = pneg %p137
      // Predicated region
      $region21: #{tpu_custom_call.1} parent=5 // pred_check
        _
      $region22: #{tpu_custom_call.1} parent=5 // pred_check_branch
        %140 = sbr.rel (%p137) target = $region24
      $region23: #{tpu_custom_call.1} parent=5 // pred_region
        %s141 = ssub.s32 %s18, 1
        %s142 = sand.u32 %s52, 1
        %s143 = scalar_lea.sflag [#allocation7], %s142
        %s144 = sand.u32 %s52, 1
        %s145 = smul.addr %s144, 8
        %s146 = scalar_lea.vmem [#allocation6], %s145
        // Predicated region
        $region25: #{tpu_custom_call.1} parent=23 // pred_check
          %p147 = pneg %p65
        $region26: #{tpu_custom_call.1} parent=23 // pred_check_branch
          %149 = sbr.rel (%p147) target = $region28
        $region27: #{tpu_custom_call.1} parent=23 // pred_region
          %150 = dma.done %s143, 128
        $region28: #{tpu_custom_call.1} parent=23 // pred_fallthru
          _
        %s151 = sand.u32 %s52, 1
        %s152 = scalar_lea.sflag [#allocation7], %s151
        %s153 = sand.u32 %s52, 1
        %s154 = smul.addr %s153, 8
        %s155 = scalar_lea.vmem [#allocation6], %s154
        %p156 = pneg %p65
        %p157 = pneg %p62
        %p158 = pneg %p95
        %p159 = pneg %p92
        %s160 = sand.u32 %s82, 1
        %s161 = scalar_lea.sflag [#allocation8], %s160
        %s162 = sand.u32 %s82, 1
        %s163 = smul.addr %s162, 8
        %s164 = scalar_lea.vmem [#allocation9], %s163
        %s165 = smul.u32 2, %s30
        %s166 = smul.u32 %s30, %s29
        %s167 = smul.u32 2, %s166
        %p168 = scmp.eq.s32.totalorder %s29, 0
        // Predicated region
        $region29: #{tpu_custom_call.1} parent=23 // pred_check
          %p169 = pneg %p168
        $region30: #{tpu_custom_call.1} parent=23 // pred_check_branch
          %171 = sbr.rel (%p169) target = $region32
        $region31: #{tpu_custom_call.1} parent=23 // pred_region
          %p172 = scmp.eq.s32.totalorder %s30, 0
          // Predicated region
          $region33: #{tpu_custom_call.1} parent=31 // pred_check
            %p173 = pneg %p172
          $region34: #{tpu_custom_call.1} parent=31 // pred_check_branch
            %175 = sbr.rel (%p173) target = $region36
          $region35: #{tpu_custom_call.1} parent=31 // pred_region
            %vm176 = vcmask 7168
            %177 = vst.msk [vmem:[#allocation2] sm:$0xff] %vm176, 0.0
          $region36: #{tpu_custom_call.1} parent=31 // pred_fallthru
            _
          %v178 = vld [vmem:[%s146] sm:$0xff]
          %v179 = vld [vmem:[#allocation2] sm:$0xf]
          %v181 = vcombine.high %v178, %v178
          %vm183 = vcmask 1043456
          %v184 = vsel %vm183, %v178, 0.0
          %v185 = vsel %vm183, %v181, 0.0
          %v186 = vadd.f32 %v184, %v185
          %187 = vadd.xlane.f32.xlu0 %v186
          %v188 = vpop.xlane.xlu0 %187
          %v189 = vadd.f32 %v179, %v188
          %vm190 = vcmask 3072
          %191 = vst.msk [vmem:[#allocation2] sm:$0xf] %vm190, %v189
        $region32: #{tpu_custom_call.1} parent=23 // pred_fallthru
          _
        %p192 = scmp.eq.s32.totalorder %s29, 1
        // Predicated region
        $region37: #{tpu_custom_call.1} parent=23 // pred_check
          %p193 = pneg %p192
        $region38: #{tpu_custom_call.1} parent=23 // pred_check_branch
          %195 = sbr.rel (%p193) target = $region40
        $region39: #{tpu_custom_call.1} parent=23 // pred_region
          %p196 = scmp.eq.s32.totalorder %s30, 0
          // Predicated region
          $region41: #{tpu_custom_call.1} parent=39 // pred_check
            %p197 = pneg %p196
          $region42: #{tpu_custom_call.1} parent=39 // pred_check_branch
            %199 = sbr.rel (%p197) target = $region44
          $region43: #{tpu_custom_call.1} parent=39 // pred_region
            %v200 = vld [vmem:[#allocation2] sm:$0xff]
            %v201 = vmul.f32 %v200, 0.00390625
            %v202 = vlaneseq
            %v203 = vshrl.u32 %v202, 7
            %v204 = vrot.slane %v201, 7
            %vm205 = vcmp.eq.s32.totalorder %v203, 0
            %v206 = vsel %vm205, 0.0, %v204
            %v207 = vrot.slane %v201, 1
            %vm208 = vcmp.eq.s32.totalorder %v203, 3
            %v209 = vsel %vm208, 0.0, %v207
            %s210 = sld [smem:[#allocation5]]
            %v211 = vstv %s210
            %v212 = vmul.f32 %v211, %v206
            %s213 = sld [smem:[#allocation5 + $0x1]]
            %v214 = vstv %s213
            %v215 = vmul.f32 %v214, %v201
            %v216 = vadd.f32 %v212, %v215
            %s217 = sld [smem:[#allocation5 + $0x2]]
            %v218 = vstv %s217
            %v219 = vmul.f32 %v218, %v209
            %v220 = vadd.f32 %v216, %v219
            %v221 = vxor.u32 %v220, 2147483648
            %v222 = vmul.f32 %v221, 1.442695
            %v223 = vpow.pop %v222
            %v224 = vadd.f32 %v223, 1.0
            %v225 = vrcp.pop %v224
            %v226 = vmul.f32 1.0, %v225
            %vm227 = vcmask 7168
            %228 = vst.msk [vmem:[#allocation3] sm:$0xff] %vm227, %v226
          $region44: #{tpu_custom_call.1} parent=39 // pred_fallthru
            _
          %v229 = vld [vmem:[#allocation3] sm:$0xf]
          %v230 = vld [vmem:[%s146] sm:$0xff]
          %232 = vset.pattern.permute.xlu0 0
          %233 = vperm.xlu0 %232, %v229
          %v234 = vpop.permute.xlu0 %233
          %v236 = vunpack.c.l.s4 839922192
          %v237 = vunpack.c.0.s8 %v236
          %v238 = vlaneseq
          %v239 = vshrl.u32 %v238, 7
          %v240 = vsub.s32 %v237, %v239
          %v241 = vrot.slane %v234, %v240
          %v243 = vmul.f32 %v230, %v241
          %244 = vst [vmem:[%s164] sm:$0xff] %v243
        $region40: #{tpu_custom_call.1} parent=23 // pred_fallthru
          _
        %s245 = sand.u32 %s82, 1
        %s246 = scalar_lea.sflag [#allocation8], %s245
        %s247 = sand.u32 %s82, 1
        %s248 = smul.addr %s247, 8
        %s249 = scalar_lea.vmem [#allocation9], %s248
        // Predicated region
        $region45: #{tpu_custom_call.1} parent=23 // pred_check
          %p250 = pneg %p92
        $region46: #{tpu_custom_call.1} parent=23 // pred_check_branch
          %252 = sbr.rel (%p250) target = $region48
        $region47: #{tpu_custom_call.1} parent=23 // pred_region
          %s253 = smul.u32 %s30, %s29
          %s254 = smul.u32 2, %s253
          %s256 = ssub.s32 128, 128
          %257 = vsyncadd %s246, %s256
          %s258 = smul.addr %s28, 2
          %s259 = sadd.s32 %s254, %s258
          %s260 = smul.addr %s259, 64
          %s261 = scalar_lea.hbm %s2, %s260
          %s263 = sshll.u32 %s249, 4
          %s264 = int_to_ptr.vmem [resolvable:$true] %s263
          %266 = dma.vmem_to_hbm [thread:$0]  %s264, 128, %s261, %s246
        $region48: #{tpu_custom_call.1} parent=23 // pred_fallthru
          _
      $region24: #{tpu_custom_call.1} parent=5 // pred_fallthru
        _
      %p267 = scmp.le.s32.totalorder 2, %s18
      // Predicated region
      $region49: #{tpu_custom_call.1} parent=5 // pred_check
        %p268 = pneg %p267
      $region50: #{tpu_custom_call.1} parent=5 // pred_check_branch
        %270 = sbr.rel (%p268) target = $region52
      $region51: #{tpu_custom_call.1} parent=5 // pred_region
        %s271 = ssub.s32 %s18, 2
        // Predicated region
        $region53: #{tpu_custom_call.1} parent=51 // pred_check
          %p272 = pneg %p98
        $region54: #{tpu_custom_call.1} parent=51 // pred_check_branch
          %274 = sbr.rel (%p272) target = $region56
        $region55: #{tpu_custom_call.1} parent=51 // pred_region
          %s275 = sand.u32 %s83, 1
          %s276 = scalar_lea.sflag [#allocation8], %s275
          %s277 = sand.u32 %s83, 1
          %s278 = smul.addr %s277, 8
          %s279 = scalar_lea.vmem [#allocation9], %s278
          %280 = dma.done %s276, 128
        $region56: #{tpu_custom_call.1} parent=51 // pred_fallthru
          _
      $region52: #{tpu_custom_call.1} parent=5 // pred_fallthru
        _
    $region6: #{tpu_custom_call.1} parent=1 // loop_footer
      %s22 = sadd.s32 1, %s18
    $region7: #{tpu_custom_call.1} parent=1 // loop_footer_branch
      %17 = sbr.rel target = $region3
    $region8: #{tpu_custom_call.1} parent=1 // loop_exit
      _
    %281 = vsyncpa [#allocation7], 1
    %s282 = scalar_lea.sflag [#allocation7], 1
    %283 = vsyncpa %s282, 1
    %284 = vsyncpa [#allocation8], 1
    %s285 = scalar_lea.sflag [#allocation8], 1
    %286 = vsyncpa %s285, 1

</llo_original>
